<compile_context>
chip_gen: v7x
topology: tpu7x:2x2x1
jax: 0.10.0
libtpu: 0.0.40
codegen_flags: <defaults>
</compile_context>

<pallas_src>
import jax
import jax.numpy as jnp
import numpy as np
from jax.experimental import pallas as pl
from jax.experimental.pallas import tpu as pltpu


def _make_coordatt_kernel(Nb, C, H, W, TC, COUT):
    HW = H * W
    NC = Nb * C

    def kernel(x_ref, pool_ref, eh_ref, ew_ref,
               w1_ref, b1_ref, w234_ref, b234_ref, wf_ref, o_ref):
        x2d = x_ref[...]                                            # (Nb*C, HW), single read

        # ---------- coordinate + global pooling: ONE lane-dense matmul ----------
        # pooled = [x_h (H cols) | x_w (W cols) | x_c (1 col)]
        pooled = jnp.dot(x2d, pool_ref[...],
                         preferred_element_type=jnp.float32)        # (Nb*C, H+W+1)

        # ---------- conv1 (1x1, BN folded, block-diag over Nb) + h_swish ----------
        y = jnp.dot(w1_ref[...], pooled,
                    preferred_element_type=jnp.float32) + b1_ref[...]   # (Nb*TC, H+W+1)
        y = y * jnp.clip(y + 3.0, 0.0, 6.0) * (1.0 / 6.0)               # h_swish

        # ---------- conv2|conv3|conv4 + sigmoid: ONE stacked matmul ----------
        z = jax.nn.sigmoid(
            jnp.dot(w234_ref[...], y, preferred_element_type=jnp.float32)
            + b234_ref[...])                                        # (3*Nb*C, H+W+1)
        out_h = z[0 * NC:1 * NC, 0:H]                               # (Nb*C, H)
        out_w = z[1 * NC:2 * NC, H:H + W]                           # (Nb*C, W)
        out_c = z[2 * NC:3 * NC, H + W:H + W + 1]                   # (Nb*C, 1)

        # ---------- expand gates to lane-dense (Nb*C, HW) via one-hot matmuls ----
        gh = jnp.dot(out_h, eh_ref[...],
                     preferred_element_type=jnp.float32)            # (Nb*C, HW)
        gwc = jnp.dot(out_w * out_c, ew_ref[...],
                      preferred_element_type=jnp.float32)           # (Nb*C, HW)

        # ---------- gating + fusion 1x1 conv: ONE matmul, ONE full-slab store ----
        gated = x2d * (gh * gwc)                                    # (Nb*C, HW)
        o_ref[...] = jnp.dot(wf_ref[...], gated,
                             preferred_element_type=jnp.float32).astype(o_ref.dtype)

    return kernel


def coord_attention(x, params, *, batch_block=None):
    N, C, H, W = x.shape
    HW = H * W
    w1 = params["w1"]
    TC = w1.shape[0]
    wf = params["wf"]
    COUT = wf.shape[0]

    # Pick the smallest batch block Nb dividing N such that Nb*C fills the f32
    # sublane tile (>= 8); fall back to N.
    if batch_block is None:
        batch_block = N
        for nb in range(1, N + 1):
            if N % nb == 0 and nb * C >= 8:
                batch_block = nb
                break
    Nb = batch_block
    G = N // Nb

    # Fold eval-mode BatchNorm into conv1: w1' = s*w1, b1' = s*b1 + (beta - mean*s)
    eps = 1e-5  # must match the module's BatchNorm2d eps
    scale = params["bn_gamma"] / jnp.sqrt(params["bn_var"] + eps)            # (TC,)
    w1f = (w1 * scale[:, None]).astype(jnp.float32)                          # (TC, C)
    b1f = (params["b1"] * scale + params["bn_beta"]
           - params["bn_mean"] * scale).astype(jnp.float32)                  # (TC,)

    # Block-diagonal weights so Nb batch elements share one matmul each.
    eye = jnp.eye(Nb, dtype=jnp.float32)

    def bd(w):                       # (O, I) -> (Nb*O, Nb*I)
        return jnp.kron(eye, w.astype(jnp.float32))

    def bdb(b):                      # (O,)  -> (Nb*O, 1)
        return jnp.tile(b.astype(jnp.float32), Nb).reshape(Nb * b.shape[0], 1)

    w1_bd = bd(w1f)                                                          # (Nb*TC, Nb*C)
    b1_bd = bdb(b1f)                                                         # (Nb*TC, 1)
    w234 = jnp.concatenate([bd(params["w2"]), bd(params["w3"]), bd(params["w4"])],
                           axis=0)                                           # (3*Nb*C, Nb*TC)
    b234 = jnp.concatenate([bdb(params["b2"]), bdb(params["b3"]), bdb(params["b4"])],
                           axis=0)                                           # (3*Nb*C, 1)
    wf_bd = bd(wf)                                                           # (Nb*COUT, Nb*C)

    # Pooling matrix P = [eh.T/W | ew.T/H | 1/HW] and one-hot expansion matrices.
    hw_h = jnp.arange(HW) // W
    hw_w = jnp.arange(HW) % W
    eh = (hw_h[None, :] == jnp.arange(H)[:, None]).astype(jnp.float32)       # (H, HW)
    ew = (hw_w[None, :] == jnp.arange(W)[:, None]).astype(jnp.float32)       # (W, HW)
    pool = jnp.concatenate(
        [eh.T * (1.0 / W), ew.T * (1.0 / H), jnp.full((HW, 1), 1.0 / HW, jnp.float32)],
        axis=1)                                                              # (HW, H+W+1)
    L = H + W + 1

    x2d = x.reshape(N * C, HW)                                               # lane-dense view

    def const2d(shape):
        return pl.BlockSpec(shape, lambda g: (0, 0))

    kernel = _make_coordatt_kernel(Nb, C, H, W, TC, COUT)
    out2d = pl.pallas_call(
        kernel,
        out_shape=jax.ShapeDtypeStruct((N * COUT, HW), x.dtype),
        grid=(G,),
        in_specs=[
            pl.BlockSpec((Nb * C, HW), lambda g: (g, 0)),
            const2d((HW, L)),                 # pooling matrix
            const2d((H, HW)),                 # one-hot H expansion
            const2d((W, HW)),                 # one-hot W expansion
            const2d((Nb * TC, Nb * C)),       # conv1 (BN folded, block-diag)
            const2d((Nb * TC, 1)),
            const2d((3 * Nb * C, Nb * TC)),   # stacked conv2|conv3|conv4
            const2d((3 * Nb * C, 1)),
            const2d((Nb * COUT, Nb * C)),     # fusion conv (block-diag)
        ],
        out_specs=pl.BlockSpec((Nb * COUT, HW), lambda g: (g, 0)),
        compiler_params=pltpu.CompilerParams(dimension_semantics=("parallel",)),
    )(x2d, pool, eh, ew, w1_bd, b1_bd, w234, b234, wf_bd)
    return out2d.reshape(N, COUT, H, W)


def reference(x, params):
    """Pure-JAX reference mirroring the PyTorch forward (eval-mode BN)."""
    eps = 1e-5
    N, C, H, W = x.shape

    def conv1x1(t, w, b=None):
        y = jnp.einsum("nchw,oc->nohw", t, w)
        if b is not None:
            y = y + b[None, :, None, None]
        return y

    x_h = jnp.mean(x, axis=3, keepdims=True)                                  # (N,C,H,1)
    x_w = jnp.transpose(jnp.mean(x, axis=2, keepdims=True), (0, 1, 3, 2))     # (N,C,W,1)
    x_c = jnp.mean(x, axis=(2, 3), keepdims=True)                             # (N,C,1,1)
    cat = jnp.concatenate([x_h, x_w, x_c], axis=2)                            # (N,C,H+W+1,1)

    y = conv1x1(cat, params["w1"], params["b1"])
    scale = params["bn_gamma"] / jnp.sqrt(params["bn_var"] + eps)
    shift = params["bn_beta"] - params["bn_mean"] * scale
    y = y * scale[None, :, None, None] + shift[None, :, None, None]
    y = y * jnp.clip(y + 3.0, 0.0, 6.0) / 6.0                                 # h_swish

    yh, yw, yc = y[:, :, :H], y[:, :, H:H + W], y[:, :, H + W:]
    yw = jnp.transpose(yw, (0, 1, 3, 2))
    out_h = jax.nn.sigmoid(conv1x1(yh, params["w2"], params["b2"]))
    out_w = jax.nn.sigmoid(conv1x1(yw, params["w3"], params["b3"]))
    out_c = jax.nn.sigmoid(conv1x1(yc, params["w4"], params["b4"]))
    short = x * out_w * out_h * out_c
    return conv1x1(short, params["wf"])


if __name__ == "__main__":
    # Shapes consistent with the module: in_channels=4, out_channel=8,
    # reduction=32 -> temp_c = max(8, 4 // 32) = 8.
    N, C, H, W = 2, 4, 16, 16
    COUT, TC = 8, max(8, C // 32)

    key = jax.random.PRNGKey(0)
    ks = jax.random.split(key, 16)

    def init(k, shape, scale=0.3):
        return (scale * jax.random.normal(k, shape)).astype(jnp.float32)

    params = dict(
        w1=init(ks[0], (TC, C)), b1=init(ks[1], (TC,)),
        bn_gamma=(1.0 + 0.1 * jax.random.normal(ks[2], (TC,))).astype(jnp.float32),
        bn_beta=(0.1 * jax.random.normal(ks[3], (TC,))).astype(jnp.float32),
        bn_mean=(0.1 * jax.random.normal(ks[4], (TC,))).astype(jnp.float32),
        bn_var=jnp.abs(1.0 + 0.1 * jax.random.normal(ks[5], (TC,))).astype(jnp.float32),
        w2=init(ks[6], (C, TC)), b2=init(ks[7], (C,)),
        w3=init(ks[8], (C, TC)), b3=init(ks[9], (C,)),
        w4=init(ks[10], (C, TC)), b4=init(ks[11], (C,)),
        wf=init(ks[12], (COUT, C)),
    )
    x = jax.random.normal(ks[13], (N, C, H, W), dtype=jnp.float32)

    out = coord_attention(x, params)
    out = jax.block_until_ready(out)
    assert out.shape == (N, COUT, H, W)

    ref = reference(x, params)
    np.testing.assert_allclose(np.asarray(out), np.asarray(ref), rtol=1e-4, atol=1e-4)
    print("KERNEL_OK")
</pallas_src>

<mosaic_0001>
module attributes {stable_mosaic.version = 11 : i64} {
  func.func @kernel(%arg0: i32, %arg1: memref<8x256xf32, #tpu.memory_space<vmem>>, %arg2: memref<256x33xf32, #tpu.memory_space<vmem>>, %arg3: memref<16x256xf32, #tpu.memory_space<vmem>>, %arg4: memref<16x256xf32, #tpu.memory_space<vmem>>, %arg5: memref<16x8xf32, #tpu.memory_space<vmem>>, %arg6: memref<16x1xf32, #tpu.memory_space<vmem>>, %arg7: memref<24x16xf32, #tpu.memory_space<vmem>>, %arg8: memref<24x1xf32, #tpu.memory_space<vmem>>, %arg9: memref<16x8xf32, #tpu.memory_space<vmem>>, %arg10: memref<16x256xf32, #tpu.memory_space<vmem>>) attributes {dimension_semantics = [#tpu.dimension_semantics<parallel>], iteration_bounds = array<i64: 1>, scalar_prefetch = 0 : i64, scratch_operands = 0 : i64, tpu.core_type = #tpu.core_type<tc>, window_params = [{transform_indices = @transform_0, window_bounds = array<i64: 8, 256>}, {pipeline_mode = #tpu.pipeline_mode<synchronous>, transform_indices = @transform_1, window_bounds = array<i64: 256, 33>}, {pipeline_mode = #tpu.pipeline_mode<synchronous>, transform_indices = @transform_2, window_bounds = array<i64: 16, 256>}, {pipeline_mode = #tpu.pipeline_mode<synchronous>, transform_indices = @transform_3, window_bounds = array<i64: 16, 256>}, {pipeline_mode = #tpu.pipeline_mode<synchronous>, transform_indices = @transform_4, window_bounds = array<i64: 16, 8>}, {pipeline_mode = #tpu.pipeline_mode<synchronous>, transform_indices = @transform_5, window_bounds = array<i64: 16, 1>}, {pipeline_mode = #tpu.pipeline_mode<synchronous>, transform_indices = @transform_6, window_bounds = array<i64: 24, 16>}, {pipeline_mode = #tpu.pipeline_mode<synchronous>, transform_indices = @transform_7, window_bounds = array<i64: 24, 1>}, {pipeline_mode = #tpu.pipeline_mode<synchronous>, transform_indices = @transform_8, window_bounds = array<i64: 16, 8>}, {transform_indices = @transform_9, window_bounds = array<i64: 16, 256>}]} {
    %c0 = arith.constant 0 : index
    %c0_0 = arith.constant 0 : index
    %0 = vector.load %arg1[%c0, %c0_0] : memref<8x256xf32, #tpu.memory_space<vmem>>, vector<8x256xf32>
    %c0_1 = arith.constant 0 : index
    %c0_2 = arith.constant 0 : index
    %1 = vector.load %arg2[%c0_1, %c0_2] : memref<256x33xf32, #tpu.memory_space<vmem>>, vector<256x33xf32>
    %cst = arith.constant dense<0.000000e+00> : vector<8x33xf32>
    %2 = tpu.matmul %0, %1, %cst {dimension_numbers = #tpu.dot_dimension_numbers<[1], [0], [0], [1], [0, 0, 1, 1], [], []>} : vector<8x256xf32>, vector<256x33xf32>, vector<8x33xf32> -> vector<8x33xf32>
    %c0_3 = arith.constant 0 : index
    %c0_4 = arith.constant 0 : index
    %3 = vector.load %arg5[%c0_3, %c0_4] : memref<16x8xf32, #tpu.memory_space<vmem>>, vector<16x8xf32>
    %cst_5 = arith.constant dense<0.000000e+00> : vector<16x33xf32>
    %4 = tpu.matmul %3, %2, %cst_5 {dimension_numbers = #tpu.dot_dimension_numbers<[1], [0], [0], [1], [0, 0, 1, 1], [], []>} : vector<16x8xf32>, vector<8x33xf32>, vector<16x33xf32> -> vector<16x33xf32>
    %c0_6 = arith.constant 0 : index
    %c0_7 = arith.constant 0 : index
    %5 = vector.load %arg6[%c0_6, %c0_7] : memref<16x1xf32, #tpu.memory_space<vmem>>, vector<16x1xf32>
    %6 = vector.broadcast %5 : vector<16x1xf32> to vector<16x33xf32>
    %7 = arith.addf %4, %6 : vector<16x33xf32>
    %cst_8 = arith.constant 3.000000e+00 : f32
    %8 = vector.broadcast %cst_8 : f32 to vector<16x33xf32>
    %9 = arith.addf %7, %8 : vector<16x33xf32>
    %cst_9 = arith.constant 0.000000e+00 : f32
    %cst_10 = arith.constant 6.000000e+00 : f32
    %10 = vector.broadcast %cst_9 : f32 to vector<16x33xf32>
    %11 = arith.maximumf %10, %9 : vector<16x33xf32>
    %12 = vector.broadcast %cst_10 : f32 to vector<16x33xf32>
    %13 = arith.minimumf %12, %11 : vector<16x33xf32>
    %14 = arith.mulf %7, %13 : vector<16x33xf32>
    %cst_11 = arith.constant 0.166666672 : f32
    %15 = vector.broadcast %cst_11 : f32 to vector<16x33xf32>
    %16 = arith.mulf %14, %15 : vector<16x33xf32>
    %c0_12 = arith.constant 0 : index
    %c0_13 = arith.constant 0 : index
    %17 = vector.load %arg7[%c0_12, %c0_13] : memref<24x16xf32, #tpu.memory_space<vmem>>, vector<24x16xf32>
    %cst_14 = arith.constant dense<0.000000e+00> : vector<24x33xf32>
    %18 = tpu.matmul %17, %16, %cst_14 {dimension_numbers = #tpu.dot_dimension_numbers<[1], [0], [0], [1], [0, 0, 1, 1], [], []>} : vector<24x16xf32>, vector<16x33xf32>, vector<24x33xf32> -> vector<24x33xf32>
    %c0_15 = arith.constant 0 : index
    %c0_16 = arith.constant 0 : index
    %19 = vector.load %arg8[%c0_15, %c0_16] : memref<24x1xf32, #tpu.memory_space<vmem>>, vector<24x1xf32>
    %20 = vector.broadcast %19 : vector<24x1xf32> to vector<24x33xf32>
    %21 = arith.addf %18, %20 : vector<24x33xf32>
    %22 = arith.negf %21 : vector<24x33xf32>
    %23 = math.exp %22 : vector<24x33xf32>
    %cst_17 = arith.constant 1.000000e+00 : f32
    %24 = vector.broadcast %cst_17 : f32 to vector<24x33xf32>
    %25 = arith.addf %24, %23 : vector<24x33xf32>
    %26 = arith.divf %24, %25 : vector<24x33xf32>
    %27 = vector.extract_strided_slice %26 {offsets = [0, 0], sizes = [8, 16], strides = [1, 1]} : vector<24x33xf32> to vector<8x16xf32>
    %28 = vector.extract_strided_slice %26 {offsets = [8, 16], sizes = [8, 16], strides = [1, 1]} : vector<24x33xf32> to vector<8x16xf32>
    %29 = vector.extract_strided_slice %26 {offsets = [16, 32], sizes = [8, 1], strides = [1, 1]} : vector<24x33xf32> to vector<8x1xf32>
    %c0_18 = arith.constant 0 : index
    %c0_19 = arith.constant 0 : index
    %30 = vector.load %arg3[%c0_18, %c0_19] : memref<16x256xf32, #tpu.memory_space<vmem>>, vector<16x256xf32>
    %cst_20 = arith.constant dense<0.000000e+00> : vector<8x256xf32>
    %31 = tpu.matmul %27, %30, %cst_20 {dimension_numbers = #tpu.dot_dimension_numbers<[1], [0], [0], [1], [0, 0, 1, 1], [], []>} : vector<8x16xf32>, vector<16x256xf32>, vector<8x256xf32> -> vector<8x256xf32>
    %32 = vector.broadcast %29 : vector<8x1xf32> to vector<8x16xf32>
    %33 = arith.mulf %28, %32 : vector<8x16xf32>
    %c0_21 = arith.constant 0 : index
    %c0_22 = arith.constant 0 : index
    %34 = vector.load %arg4[%c0_21, %c0_22] : memref<16x256xf32, #tpu.memory_space<vmem>>, vector<16x256xf32>
    %cst_23 = arith.constant dense<0.000000e+00> : vector<8x256xf32>
    %35 = tpu.matmul %33, %34, %cst_23 {dimension_numbers = #tpu.dot_dimension_numbers<[1], [0], [0], [1], [0, 0, 1, 1], [], []>} : vector<8x16xf32>, vector<16x256xf32>, vector<8x256xf32> -> vector<8x256xf32>
    %36 = arith.mulf %31, %35 : vector<8x256xf32>
    %37 = arith.mulf %0, %36 : vector<8x256xf32>
    %c0_24 = arith.constant 0 : index
    %c0_25 = arith.constant 0 : index
    %38 = vector.load %arg9[%c0_24, %c0_25] : memref<16x8xf32, #tpu.memory_space<vmem>>, vector<16x8xf32>
    %cst_26 = arith.constant dense<0.000000e+00> : vector<16x256xf32>
    %39 = tpu.matmul %38, %37, %cst_26 {dimension_numbers = #tpu.dot_dimension_numbers<[1], [0], [0], [1], [0, 0, 1, 1], [], []>} : vector<16x8xf32>, vector<8x256xf32>, vector<16x256xf32> -> vector<16x256xf32>
    %c0_27 = arith.constant 0 : index
    %c0_28 = arith.constant 0 : index
    %40 = vector.load %arg10[%c0_27, %c0_28] : memref<16x256xf32, #tpu.memory_space<vmem>>, vector<16x256xf32>
    tpu.vector_store %arg10[%c0_27, %c0_28], %39 {strides = array<i32>} : memref<16x256xf32, #tpu.memory_space<vmem>>, vector<16x256xf32>,
    return
  }
  func.func @transform_0(%arg0: i32) -> (i32, i32) {
    %c0_i32 = arith.constant 0 : i32
    %c0_i32_0 = arith.constant 0 : i32
    return %arg0, %c0_i32 : i32, i32
  }
  func.func @transform_1(%arg0: i32) -> (i32, i32) {
    %c0_i32 = arith.constant 0 : i32
    %c0_i32_0 = arith.constant 0 : i32
    %c0_i32_1 = arith.constant 0 : i32
    return %c0_i32, %c0_i32_0 : i32, i32
  }
  func.func @transform_2(%arg0: i32) -> (i32, i32) {
    %c0_i32 = arith.constant 0 : i32
    %c0_i32_0 = arith.constant 0 : i32
    %c0_i32_1 = arith.constant 0 : i32
    return %c0_i32, %c0_i32_0 : i32, i32
  }
  func.func @transform_3(%arg0: i32) -> (i32, i32) {
    %c0_i32 = arith.constant 0 : i32
    %c0_i32_0 = arith.constant 0 : i32
    %c0_i32_1 = arith.constant 0 : i32
    return %c0_i32, %c0_i32_0 : i32, i32
  }
  func.func @transform_4(%arg0: i32) -> (i32, i32) {
    %c0_i32 = arith.constant 0 : i32
    %c0_i32_0 = arith.constant 0 : i32
    %c0_i32_1 = arith.constant 0 : i32
    return %c0_i32, %c0_i32_0 : i32, i32
  }
  func.func @transform_5(%arg0: i32) -> (i32, i32) {
    %c0_i32 = arith.constant 0 : i32
    %c0_i32_0 = arith.constant 0 : i32
    %c0_i32_1 = arith.constant 0 : i32
    return %c0_i32, %c0_i32_0 : i32, i32
  }
  func.func @transform_6(%arg0: i32) -> (i32, i32) {
    %c0_i32 = arith.constant 0 : i32
    %c0_i32_0 = arith.constant 0 : i32
    %c0_i32_1 = arith.constant 0 : i32
    return %c0_i32, %c0_i32_0 : i32, i32
  }
  func.func @transform_7(%arg0: i32) -> (i32, i32) {
    %c0_i32 = arith.constant 0 : i32
    %c0_i32_0 = arith.constant 0 : i32
    %c0_i32_1 = arith.constant 0 : i32
    return %c0_i32, %c0_i32_0 : i32, i32
  }
  func.func @transform_8(%arg0: i32) -> (i32, i32) {
    %c0_i32 = arith.constant 0 : i32
    %c0_i32_0 = arith.constant 0 : i32
    %c0_i32_1 = arith.constant 0 : i32
    return %c0_i32, %c0_i32_0 : i32, i32
  }
  func.func @transform_9(%arg0: i32) -> (i32, i32) {
    %c0_i32 = arith.constant 0 : i32
    %c0_i32_0 = arith.constant 0 : i32
    return %arg0, %c0_i32 : i32, i32
  }
}

</mosaic_0001>

<llo_original>
// kernel: tpu_custom_call.1
$region0: #{tpu_custom_call.1}
  #allocation0 [shape = 'u32[]', space=smem, size = 0x4, offset = 0x4, fixed_abs, tag = 'smem constant byte address 0x4 - core index']
  #allocation1 [shape = 'u32[144,128]{1,0:T(1,128)}', space=vmem, size = 0x12000, scoped, tag = 'internal scratch']
  %s0 = inlined_call_operand.vmem [shape: f32[8,256], index: 0, kind: input, shape index: {}]
  %s1 = inlined_call_operand.vmem [shape: f32[256,33], index: 1, kind: input, shape index: {}]
  %s2 = inlined_call_operand.vmem [shape: f32[16,256], index: 2, kind: input, shape index: {}]
  %s3 = inlined_call_operand.vmem [shape: f32[16,256], index: 3, kind: input, shape index: {}]
  %s4 = inlined_call_operand.vmem [shape: f32[16,8], index: 4, kind: input, shape index: {}]
  %s5 = inlined_call_operand.vmem [shape: f32[16,1], index: 5, kind: input, shape index: {}]
  %s6 = inlined_call_operand.vmem [shape: f32[24,16], index: 6, kind: input, shape index: {}]
  %s7 = inlined_call_operand.vmem [shape: f32[24,1], index: 7, kind: input, shape index: {}]
  %s8 = inlined_call_operand.vmem [shape: f32[16,8], index: 8, kind: input, shape index: {}]
  %s9 = inlined_call_operand.hbm [shape: f32[16,256], index: 9, kind: output, shape index: {}]
  %s10 = sld [smem:[#allocation0]]
  $region46: #{tpu_custom_call.1} parent=0
    _
  %s12 = ssub.s32 1, %s10
  %s13 = scalar_select 0, %s12, %s10
  $region1: #{tpu_custom_call.1} parent=0
    #allocation2 [shape = 'u8[16384]{0}', space=vmem, size = 0x4000, scoped, tag = 'output window, operand 0, single buffered']
    #allocation3 [shape = 's32[1]{0}', space=sflag, size = 0x4, scoped, tag = 'scoped memory for tpu_custom_call.1']
    %14 = vsyncpa [#allocation3], 0
    // Predicated region
    $region2: #{tpu_custom_call.1} parent=1 // pred_check
      _
    $region3: #{tpu_custom_call.1} parent=1 // pred_check_branch
      %16 = sbr.rel (0) target = $region5
    $region4: #{tpu_custom_call.1} parent=1 // pred_region
      _
    $region5: #{tpu_custom_call.1} parent=1 // pred_fallthru
      _
    // Predicated region
    $region6: #{tpu_custom_call.1} parent=1 // pred_check
      _
    $region7: #{tpu_custom_call.1} parent=1 // pred_check_branch
      %18 = sbr.rel (0) target = $region9
    $region8: #{tpu_custom_call.1} parent=1 // pred_region
      _
    $region9: #{tpu_custom_call.1} parent=1 // pred_fallthru
      _
    // Predicated region
    $region10: #{tpu_custom_call.1} parent=1 // pred_check
      _
    $region11: #{tpu_custom_call.1} parent=1 // pred_check_branch
      %20 = sbr.rel (0) target = $region13
    $region12: #{tpu_custom_call.1} parent=1 // pred_region
      _
    $region13: #{tpu_custom_call.1} parent=1 // pred_fallthru
      _
    // Predicated region
    $region14: #{tpu_custom_call.1} parent=1 // pred_check
      _
    $region15: #{tpu_custom_call.1} parent=1 // pred_check_branch
      %22 = sbr.rel (0) target = $region17
    $region16: #{tpu_custom_call.1} parent=1 // pred_region
      _
    $region17: #{tpu_custom_call.1} parent=1 // pred_fallthru
      _
    // Predicated region
    $region18: #{tpu_custom_call.1} parent=1 // pred_check
      _
    $region19: #{tpu_custom_call.1} parent=1 // pred_check_branch
      %24 = sbr.rel (0) target = $region21
    $region20: #{tpu_custom_call.1} parent=1 // pred_region
      _
    $region21: #{tpu_custom_call.1} parent=1 // pred_fallthru
      _
    // Predicated region
    $region22: #{tpu_custom_call.1} parent=1 // pred_check
      _
    $region23: #{tpu_custom_call.1} parent=1 // pred_check_branch
      %26 = sbr.rel (0) target = $region25
    $region24: #{tpu_custom_call.1} parent=1 // pred_region
      _
    $region25: #{tpu_custom_call.1} parent=1 // pred_fallthru
      _
    // Predicated region
    $region26: #{tpu_custom_call.1} parent=1 // pred_check
      _
    $region27: #{tpu_custom_call.1} parent=1 // pred_check_branch
      %28 = sbr.rel (0) target = $region29
    $region28: #{tpu_custom_call.1} parent=1 // pred_region
      _
    $region29: #{tpu_custom_call.1} parent=1 // pred_fallthru
      _
    // Predicated region
    $region30: #{tpu_custom_call.1} parent=1 // pred_check
      _
    $region31: #{tpu_custom_call.1} parent=1 // pred_check_branch
      %30 = sbr.rel (0) target = $region33
    $region32: #{tpu_custom_call.1} parent=1 // pred_region
      _
    $region33: #{tpu_custom_call.1} parent=1 // pred_fallthru
      _
    // Predicated region
    $region34: #{tpu_custom_call.1} parent=1 // pred_check
      _
    $region35: #{tpu_custom_call.1} parent=1 // pred_check_branch
      %32 = sbr.rel (0) target = $region37
    $region36: #{tpu_custom_call.1} parent=1 // pred_region
      _
    $region37: #{tpu_custom_call.1} parent=1 // pred_fallthru
      _
    %v33 = vld [vmem:[%s0] sm:$0xff]
    %v34 = vld [vmem:[%s0 + $0x8] sm:$0xff]
    %v35 = vld [vmem:[%s1] sm:$0xff]
    %v36 = vld [vmem:[%s1 + $0x8] sm:$0xff]
    %v37 = vld [vmem:[%s1 + $0x10] sm:$0xff]
    %v38 = vld [vmem:[%s1 + $0x18] sm:$0xff]
    %v39 = vld [vmem:[%s1 + $0x20] sm:$0xff]
    %v40 = vld [vmem:[%s1 + $0x28] sm:$0xff]
    %v41 = vld [vmem:[%s1 + $0x30] sm:$0xff]
    %v42 = vld [vmem:[%s1 + $0x38] sm:$0xff]
    %v43 = vld [vmem:[%s1 + $0x40] sm:$0xff]
    %v44 = vld [vmem:[%s1 + $0x48] sm:$0xff]
    %v45 = vld [vmem:[%s1 + $0x50] sm:$0xff]
    %v46 = vld [vmem:[%s1 + $0x58] sm:$0xff]
    %v47 = vld [vmem:[%s1 + $0x60] sm:$0xff]
    %v48 = vld [vmem:[%s1 + $0x68] sm:$0xff]
    %v49 = vld [vmem:[%s1 + $0x70] sm:$0xff]
    %v50 = vld [vmem:[%s1 + $0x78] sm:$0xff]
    %v51 = vld [vmem:[%s1 + $0x80] sm:$0xff]
    %v52 = vld [vmem:[%s1 + $0x88] sm:$0xff]
    %v53 = vld [vmem:[%s1 + $0x90] sm:$0xff]
    %v54 = vld [vmem:[%s1 + $0x98] sm:$0xff]
    %v55 = vld [vmem:[%s1 + $0xa0] sm:$0xff]
    %v56 = vld [vmem:[%s1 + $0xa8] sm:$0xff]
    %v57 = vld [vmem:[%s1 + $0xb0] sm:$0xff]
    %v58 = vld [vmem:[%s1 + $0xb8] sm:$0xff]
    %v59 = vld [vmem:[%s1 + $0xc0] sm:$0xff]
    %v60 = vld [vmem:[%s1 + $0xc8] sm:$0xff]
    %v61 = vld [vmem:[%s1 + $0xd0] sm:$0xff]
    %v62 = vld [vmem:[%s1 + $0xd8] sm:$0xff]
    %v63 = vld [vmem:[%s1 + $0xe0] sm:$0xff]
    %v64 = vld [vmem:[%s1 + $0xe8] sm:$0xff]
    %v65 = vld [vmem:[%s1 + $0xf0] sm:$0xff]
    %v66 = vld [vmem:[%s1 + $0xf8] sm:$0xff]
    %67 = vmatprep.subr.mxu0 0.0
    %68 = vmatpush1.msra.mxu0 %v35
    %69 = vmatprep.subr.mxu0 0.0
    %70 = vmatpush1.msra.mxu0 %v36
    %71 = vmatprep.subr.mxu0 0.0
    %72 = vmatpush1.msra.mxu0 %v37
    %73 = vmatprep.subr.mxu0 0.0
    %74 = vmatpush1.msra.mxu0 %v38
    %75 = vmatprep.subr.mxu0 0.0
    %76 = vmatpush1.msra.mxu0 %v39
    %77 = vmatprep.subr.mxu0 0.0
    %78 = vmatpush1.msra.mxu0 %v40
    %79 = vmatprep.subr.mxu0 0.0
    %80 = vmatpush1.msra.mxu0 %v41
    %81 = vmatprep.subr.mxu0 0.0
    %82 = vmatpush1.msra.mxu0 %v42
    %83 = vmatprep.subr.mxu0 0.0
    %84 = vmatpush1.msra.mxu0 %v43
    %85 = vmatprep.subr.mxu0 0.0
    %86 = vmatpush1.msra.mxu0 %v44
    %87 = vmatprep.subr.mxu0 0.0
    %88 = vmatpush1.msra.mxu0 %v45
    %89 = vmatprep.subr.mxu0 0.0
    %90 = vmatpush1.msra.mxu0 %v46
    %91 = vmatprep.subr.mxu0 0.0
    %92 = vmatpush1.msra.mxu0 %v47
    %93 = vmatprep.subr.mxu0 0.0
    %94 = vmatpush1.msra.mxu0 %v48
    %95 = vmatprep.subr.mxu0 0.0
    %96 = vmatpush1.msra.mxu0 %v49
    %97 = vmatprep.subr.mxu0 0.0
    %98 = vmatpush1.msra.mxu0 %v50
    %99 = vmatprep.subr.mxu0 0.0
    %100 = vmatpush1.msra.mxu0 %v51
    %101 = vmatprep.subr.mxu0 0.0
    %102 = vmatpush1.msra.mxu0 %v52
    %103 = vmatprep.subr.mxu0 0.0
    %104 = vmatpush1.msra.mxu0 %v53
    %105 = vmatprep.subr.mxu0 0.0
    %106 = vmatpush1.msra.mxu0 %v54
    %107 = vmatprep.subr.mxu0 0.0
    %108 = vmatpush1.msra.mxu0 %v55
    %109 = vmatprep.subr.mxu0 0.0
    %110 = vmatpush1.msra.mxu0 %v56
    %111 = vmatprep.subr.mxu0 0.0
    %112 = vmatpush1.msra.mxu0 %v57
    %113 = vmatprep.subr.mxu0 0.0
    %114 = vmatpush1.msra.mxu0 %v58
    %115 = vmatprep.subr.mxu0 0.0
    %116 = vmatpush1.msra.mxu0 %v59
    %117 = vmatprep.subr.mxu0 0.0
    %118 = vmatpush1.msra.mxu0 %v60
    %119 = vmatprep.subr.mxu0 0.0
    %120 = vmatpush1.msra.mxu0 %v61
    %121 = vmatprep.subr.mxu0 0.0
    %122 = vmatpush1.msra.mxu0 %v62
    %123 = vmatprep.subr.mxu0 0.0
    %124 = vmatpush1.msra.mxu0 %v63
    %125 = vmatprep.subr.mxu0 0.0
    %126 = vmatpush1.msra.mxu0 %v64
    %127 = vmatprep.subr.mxu0 0.0
    %128 = vmatpush1.msra.mxu0 %v65
    %129 = vmatprep.subr.mxu0 0.0
    %130 = vmatpush1.msra.mxu0 %v66
    %131 = vmatprep.mubr.f32.mxu0 %v34
    %132 = vmatmul.mubr.f32.gmra.mrb[0].mxu0 %v33
    %v133 = vpop.f32.mrb[0].mxu0
    %v134 = vadd.f32 0.0, %v133
    %v135 = vpop.f32.mrb[0].mxu0
    %136 = vdwg.mxu0
    %v137 = vld [vmem:[%s4] sm:$0xff]
    %v138 = vld [vmem:[%s4 + $0x8] sm:$0xff]
    %v139 = vld [vmem:[%s5] sm:$0xff]
    %v140 = vld [vmem:[%s5 + $0x8] sm:$0xff]
    %142 = vset.pattern.permute.xlu0 0
    %143 = vperm.xlu0 %142, %v139
    %v144 = vpop.permute.xlu0 %143
    %147 = vset.pattern.permute.xlu0 0
    %148 = vperm.xlu0 %147, %v140
    %v149 = vpop.permute.xlu0 %148
    %vm151 = vcmask 64512
    %v153 = vsel %vm151, %v137, 0
    %v156 = vsel %vm151, %v138, 0
    %158 = vmatprep.subr.mxu0 0.0
    %159 = vmatpush1.msra.mxu0 %v134
    %160 = vmatprep.subr.mxu0 0.0
    %161 = vmatpush1.msra.mxu0 0.0
    %162 = vmatprep.subr.mxu0 0.0
    %163 = vmatpush1.msra.mxu0 0.0
    %164 = vmatprep.subr.mxu0 0.0
    %165 = vmatpush1.msra.mxu0 0.0
    %166 = vmatprep.subr.mxu0 0.0
    %167 = vmatpush1.msra.mxu0 0.0
    %168 = vmatprep.subr.mxu0 0.0
    %169 = vmatpush1.msra.mxu0 0.0
    %170 = vmatprep.subr.mxu0 0.0
    %171 = vmatpush1.msra.mxu0 0.0
    %172 = vmatprep.subr.mxu0 0.0
    %173 = vmatpush1.msra.mxu0 0.0
    %174 = vmatprep.subr.mxu0 0.0
    %175 = vmatpush1.msra.mxu0 0.0
    %176 = vmatprep.subr.mxu0 0.0
    %177 = vmatpush1.msra.mxu0 0.0
    %178 = vmatprep.subr.mxu0 0.0
    %179 = vmatpush1.msra.mxu0 0.0
    %180 = vmatprep.subr.mxu0 0.0
    %181 = vmatpush1.msra.mxu0 0.0
    %182 = vmatprep.subr.mxu0 0.0
    %183 = vmatpush1.msra.mxu0 0.0
    %184 = vmatprep.subr.mxu0 0.0
    %185 = vmatpush1.msra.mxu0 0.0
    %186 = vmatprep.subr.mxu0 0.0
    %187 = vmatpush1.msra.mxu0 0.0
    %188 = vmatprep.subr.mxu0 0.0
    %189 = vmatpush1.msra.mxu0 0.0
    %190 = vmatprep.subr.mxu0 0.0
    %191 = vmatpush1.msra.mxu0 0.0
    %192 = vmatprep.subr.mxu0 0.0
    %193 = vmatpush1.msra.mxu0 0.0
    %194 = vmatprep.subr.mxu0 0.0
    %195 = vmatpush1.msra.mxu0 0.0
    %196 = vmatprep.subr.mxu0 0.0
    %197 = vmatpush1.msra.mxu0 0.0
    %198 = vmatprep.subr.mxu0 0.0
    %199 = vmatpush1.msra.mxu0 0.0
    %200 = vmatprep.subr.mxu0 0.0
    %201 = vmatpush1.msra.mxu0 0.0
    %202 = vmatprep.subr.mxu0 0.0
    %203 = vmatpush1.msra.mxu0 0.0
    %204 = vmatprep.subr.mxu0 0.0
    %205 = vmatpush1.msra.mxu0 0.0
    %206 = vmatprep.subr.mxu0 0.0
    %207 = vmatpush1.msra.mxu0 0.0
    %208 = vmatprep.subr.mxu0 0.0
    %209 = vmatpush1.msra.mxu0 0.0
    %210 = vmatprep.subr.mxu0 0.0
    %211 = vmatpush1.msra.mxu0 0.0
    %212 = vmatprep.subr.mxu0 0.0
    %213 = vmatpush1.msra.mxu0 0.0
    %214 = vmatprep.subr.mxu0 0.0
    %215 = vmatpush1.msra.mxu0 0.0
    %216 = vmatprep.subr.mxu0 0.0
    %217 = vmatpush1.msra.mxu0 0.0
    %218 = vmatprep.subr.mxu0 0.0
    %219 = vmatpush1.msra.mxu0 0.0
    %220 = vmatprep.subr.mxu0 0.0
    %221 = vmatpush1.msra.mxu0 0.0
    %222 = vmatprep.mubr.f32.mxu0 0.0
    %223 = vmatmul.mubr.f32.gmra.mrb[0].mxu0 %v153
    %v224 = vpop.f32.mrb[0].mxu0
    %v225 = vadd.f32 %v144, %v224
    %v226 = vpop.f32.mrb[0].mxu0
    %227 = vmatprep.mubr.f32.mxu0 0.0
    %228 = vmatmul.mubr.f32.gmra.mrb[0].mxu0 %v156
    %v229 = vpop.f32.mrb[0].mxu0
    %v230 = vadd.f32 %v149, %v229
    %v231 = vpop.f32.mrb[0].mxu0
    %232 = vdwg.mxu0
    %v233 = vadd.f32 %v225, 3.0
    %v234 = vadd.f32 %v230, 3.0
    %v235 = vmax.f32 %v233, 0.0
    %v236 = vmax.f32 %v234, 0.0
    %v237 = vmin.f32 %v235, 6.0
    %v238 = vmin.f32 %v236, 6.0
    %v239 = vmul.f32 %v225, %v237
    %v240 = vmul.f32 %v230, %v238
    %v241 = vmul.f32 %v239, 0.16666667
    %v242 = vmul.f32 %v240, 0.16666667
    %v243 = vld [vmem:[%s6] sm:$0xff]
    %v244 = vld [vmem:[%s6 + $0x8] sm:$0xff]
    %v245 = vld [vmem:[%s6 + $0x10] sm:$0xff]
    %v246 = vld [vmem:[%s7] sm:$0xff]
    %v247 = vld [vmem:[%s7 + $0x8] sm:$0xff]
    %v248 = vld [vmem:[%s7 + $0x10] sm:$0xff]
    %250 = vset.pattern.permute.xlu0 0
    %251 = vperm.xlu0 %250, %v246
    %v252 = vpop.permute.xlu0 %251
    %255 = vset.pattern.permute.xlu0 0
    %256 = vperm.xlu0 %255, %v247
    %v257 = vpop.permute.xlu0 %256
    %260 = vset.pattern.permute.xlu0 0
    %261 = vperm.xlu0 %260, %v248
    %v262 = vpop.permute.xlu0 %261
    %vm264 = vcmask 130048
    %v266 = vsel %vm264, %v243, 0
    %v269 = vsel %vm264, %v244, 0
    %v272 = vsel %vm264, %v245, 0
    %274 = vmatprep.subr.mxu0 0.0
    %275 = vmatpush1.msra.mxu0 %v241
    %276 = vmatprep.subr.mxu0 0.0
    %277 = vmatpush1.msra.mxu0 %v242
    %278 = vmatprep.subr.mxu0 0.0
    %279 = vmatpush1.msra.mxu0 0.0
    %280 = vmatprep.subr.mxu0 0.0
    %281 = vmatpush1.msra.mxu0 0.0
    %282 = vmatprep.subr.mxu0 0.0
    %283 = vmatpush1.msra.mxu0 0.0
    %284 = vmatprep.subr.mxu0 0.0
    %285 = vmatpush1.msra.mxu0 0.0
    %286 = vmatprep.subr.mxu0 0.0
    %287 = vmatpush1.msra.mxu0 0.0
    %288 = vmatprep.subr.mxu0 0.0
    %289 = vmatpush1.msra.mxu0 0.0
    %290 = vmatprep.subr.mxu0 0.0
    %291 = vmatpush1.msra.mxu0 0.0
    %292 = vmatprep.subr.mxu0 0.0
    %293 = vmatpush1.msra.mxu0 0.0
    %294 = vmatprep.subr.mxu0 0.0
    %295 = vmatpush1.msra.mxu0 0.0
    %296 = vmatprep.subr.mxu0 0.0
    %297 = vmatpush1.msra.mxu0 0.0
    %298 = vmatprep.subr.mxu0 0.0
    %299 = vmatpush1.msra.mxu0 0.0
    %300 = vmatprep.subr.mxu0 0.0
    %301 = vmatpush1.msra.mxu0 0.0
    %302 = vmatprep.subr.mxu0 0.0
    %303 = vmatpush1.msra.mxu0 0.0
    %304 = vmatprep.subr.mxu0 0.0
    %305 = vmatpush1.msra.mxu0 0.0
    %306 = vmatprep.subr.mxu0 0.0
    %307 = vmatpush1.msra.mxu0 0.0
    %308 = vmatprep.subr.mxu0 0.0
    %309 = vmatpush1.msra.mxu0 0.0
    %310 = vmatprep.subr.mxu0 0.0
    %311 = vmatpush1.msra.mxu0 0.0
    %312 = vmatprep.subr.mxu0 0.0
    %313 = vmatpush1.msra.mxu0 0.0
    %314 = vmatprep.subr.mxu0 0.0
    %315 = vmatpush1.msra.mxu0 0.0
    %316 = vmatprep.subr.mxu0 0.0
    %317 = vmatpush1.msra.mxu0 0.0
    %318 = vmatprep.subr.mxu0 0.0
    %319 = vmatpush1.msra.mxu0 0.0
    %320 = vmatprep.subr.mxu0 0.0
    %321 = vmatpush1.msra.mxu0 0.0
    %322 = vmatprep.subr.mxu0 0.0
    %323 = vmatpush1.msra.mxu0 0.0
    %324 = vmatprep.subr.mxu0 0.0
    %325 = vmatpush1.msra.mxu0 0.0
    %326 = vmatprep.subr.mxu0 0.0
    %327 = vmatpush1.msra.mxu0 0.0
    %328 = vmatprep.subr.mxu0 0.0
    %329 = vmatpush1.msra.mxu0 0.0
    %330 = vmatprep.subr.mxu0 0.0
    %331 = vmatpush1.msra.mxu0 0.0
    %332 = vmatprep.subr.mxu0 0.0
    %333 = vmatpush1.msra.mxu0 0.0
    %334 = vmatprep.subr.mxu0 0.0
    %335 = vmatpush1.msra.mxu0 0.0
    %336 = vmatprep.subr.mxu0 0.0
    %337 = vmatpush1.msra.mxu0 0.0
    %338 = vmatprep.mubr.f32.mxu0 0.0
    %339 = vmatmul.mubr.f32.gmra.mrb[0].mxu0 %v266
    %v340 = vpop.f32.mrb[0].mxu0
    %v341 = vadd.f32 %v252, %v340
    %v342 = vpop.f32.mrb[0].mxu0
    %343 = vmatprep.mubr.f32.mxu0 0.0
    %344 = vmatmul.mubr.f32.gmra.mrb[0].mxu0 %v269
    %v345 = vpop.f32.mrb[0].mxu0
    %v346 = vadd.f32 %v257, %v345
    %v347 = vpop.f32.mrb[0].mxu0
    %348 = vmatprep.mubr.f32.mxu0 0.0
    %349 = vmatmul.mubr.f32.gmra.mrb[0].mxu0 %v272
    %v350 = vpop.f32.mrb[0].mxu0
    %v351 = vadd.f32 %v262, %v350
    %v352 = vpop.f32.mrb[0].mxu0
    %353 = vdwg.mxu0
    %v354 = vxor.u32 %v341, 2147483648
    %v355 = vxor.u32 %v346, 2147483648
    %v356 = vxor.u32 %v351, 2147483648
    %v357 = vmul.f32 %v354, 1.442695
    %v358 = vpow.pop %v357
    %v359 = vmul.f32 %v355, 1.442695
    %v360 = vpow.pop %v359
    %v361 = vmul.f32 %v356, 1.442695
    %v362 = vpow.pop %v361
    %v363 = vadd.f32 %v358, 1.0
    %v364 = vadd.f32 %v360, 1.0
    %v365 = vadd.f32 %v362, 1.0
    %v366 = vrcp.pop %v363
    %v367 = vmul.f32 1.0, %v366
    %v368 = vrcp.pop %v364
    %v369 = vmul.f32 1.0, %v368
    %v370 = vrcp.pop %v365
    %v371 = vmul.f32 1.0, %v370
    %v372 = vld [vmem:[%s2] sm:$0xff]
    %v373 = vld [vmem:[%s2 + $0x8] sm:$0xff]
    %v374 = vld [vmem:[%s2 + $0x10] sm:$0xff]
    %v375 = vld [vmem:[%s2 + $0x18] sm:$0xff]
    %v377 = vsel %vm264, %v367, 0
    %379 = vmatprep.subr.mxu0 %v373
    %380 = vmatpush1.msra.mxu0 %v372
    %381 = vmatprep.subr.mxu0 %v375
    %382 = vmatpush1.msra.mxu0 %v374
    %383 = vmatprep.subr.mxu0 0.0
    %384 = vmatpush1.msra.mxu0 0.0
    %385 = vmatprep.subr.mxu0 0.0
    %386 = vmatpush1.msra.mxu0 0.0
    %387 = vmatprep.subr.mxu0 0.0
    %388 = vmatpush1.msra.mxu0 0.0
    %389 = vmatprep.subr.mxu0 0.0
    %390 = vmatpush1.msra.mxu0 0.0
    %391 = vmatprep.subr.mxu0 0.0
    %392 = vmatpush1.msra.mxu0 0.0
    %393 = vmatprep.subr.mxu0 0.0
    %394 = vmatpush1.msra.mxu0 0.0
    %395 = vmatprep.subr.mxu0 0.0
    %396 = vmatpush1.msra.mxu0 0.0
    %397 = vmatprep.subr.mxu0 0.0
    %398 = vmatpush1.msra.mxu0 0.0
    %399 = vmatprep.subr.mxu0 0.0
    %400 = vmatpush1.msra.mxu0 0.0
    %401 = vmatprep.subr.mxu0 0.0
    %402 = vmatpush1.msra.mxu0 0.0
    %403 = vmatprep.subr.mxu0 0.0
    %404 = vmatpush1.msra.mxu0 0.0
    %405 = vmatprep.subr.mxu0 0.0
    %406 = vmatpush1.msra.mxu0 0.0
    %407 = vmatprep.subr.mxu0 0.0
    %408 = vmatpush1.msra.mxu0 0.0
    %409 = vmatprep.subr.mxu0 0.0
    %410 = vmatpush1.msra.mxu0 0.0
    %411 = vmatprep.subr.mxu0 0.0
    %412 = vmatpush1.msra.mxu0 0.0
    %413 = vmatprep.subr.mxu0 0.0
    %414 = vmatpush1.msra.mxu0 0.0
    %415 = vmatprep.subr.mxu0 0.0
    %416 = vmatpush1.msra.mxu0 0.0
    %417 = vmatprep.subr.mxu0 0.0
    %418 = vmatpush1.msra.mxu0 0.0
    %419 = vmatprep.subr.mxu0 0.0
    %420 = vmatpush1.msra.mxu0 0.0
    %421 = vmatprep.subr.mxu0 0.0
    %422 = vmatpush1.msra.mxu0 0.0
    %423 = vmatprep.subr.mxu0 0.0
    %424 = vmatpush1.msra.mxu0 0.0
    %425 = vmatprep.subr.mxu0 0.0
    %426 = vmatpush1.msra.mxu0 0.0
    %427 = vmatprep.subr.mxu0 0.0
    %428 = vmatpush1.msra.mxu0 0.0
    %429 = vmatprep.subr.mxu0 0.0
    %430 = vmatpush1.msra.mxu0 0.0
    %431 = vmatprep.subr.mxu0 0.0
    %432 = vmatpush1.msra.mxu0 0.0
    %433 = vmatprep.subr.mxu0 0.0
    %434 = vmatpush1.msra.mxu0 0.0
    %435 = vmatprep.subr.mxu0 0.0
    %436 = vmatpush1.msra.mxu0 0.0
    %437 = vmatprep.subr.mxu0 0.0
    %438 = vmatpush1.msra.mxu0 0.0
    %439 = vmatprep.subr.mxu0 0.0
    %440 = vmatpush1.msra.mxu0 0.0
    %441 = vmatprep.subr.mxu0 0.0
    %442 = vmatpush1.msra.mxu0 0.0
    %443 = vmatprep.mubr.f32.mxu0 0.0
    %444 = vmatmul.mubr.f32.gmra.mrb[0].mxu0 %v377
    %v445 = vpop.f32.mrb[0].mxu0
    %v446 = vadd.f32 0.0, %v445
    %v447 = vpop.f32.mrb[0].mxu0
    %v448 = vadd.f32 0.0, %v447
    %449 = vdwg.mxu0
    %451 = vset.pattern.permute.xlu0 32
    %452 = vperm.xlu0 %451, %v371
    %v453 = vpop.permute.xlu0 %452
    %v455 = vmul.f32 %v369, %v453
    %v456 = vld [vmem:[%s3] sm:$0xff]
    %v457 = vld [vmem:[%s3 + $0x8] sm:$0xff]
    %v458 = vld [vmem:[%s3 + $0x10] sm:$0xff]
    %v459 = vld [vmem:[%s3 + $0x18] sm:$0xff]
    %461 = vrot.lane.b32.xlu0 %v455, 112
    %v462 = vpop.permute.xlu0 %461
    %v463 = vsel %vm264, %v462, 0
    %465 = vmatprep.subr.mxu0 %v457
    %466 = vmatpush1.msra.mxu0 %v456
    %467 = vmatprep.subr.mxu0 %v459
    %468 = vmatpush1.msra.mxu0 %v458
    %469 = vmatprep.subr.mxu0 0.0
    %470 = vmatpush1.msra.mxu0 0.0
    %471 = vmatprep.subr.mxu0 0.0
    %472 = vmatpush1.msra.mxu0 0.0
    %473 = vmatprep.subr.mxu0 0.0
    %474 = vmatpush1.msra.mxu0 0.0
    %475 = vmatprep.subr.mxu0 0.0
    %476 = vmatpush1.msra.mxu0 0.0
    %477 = vmatprep.subr.mxu0 0.0
    %478 = vmatpush1.msra.mxu0 0.0
    %479 = vmatprep.subr.mxu0 0.0
    %480 = vmatpush1.msra.mxu0 0.0
    %481 = vmatprep.subr.mxu0 0.0
    %482 = vmatpush1.msra.mxu0 0.0
    %483 = vmatprep.subr.mxu0 0.0
    %484 = vmatpush1.msra.mxu0 0.0
    %485 = vmatprep.subr.mxu0 0.0
    %486 = vmatpush1.msra.mxu0 0.0
    %487 = vmatprep.subr.mxu0 0.0
    %488 = vmatpush1.msra.mxu0 0.0
    %489 = vmatprep.subr.mxu0 0.0
    %490 = vmatpush1.msra.mxu0 0.0
    %491 = vmatprep.subr.mxu0 0.0
    %492 = vmatpush1.msra.mxu0 0.0
    %493 = vmatprep.subr.mxu0 0.0
    %494 = vmatpush1.msra.mxu0 0.0
    %495 = vmatprep.subr.mxu0 0.0
    %496 = vmatpush1.msra.mxu0 0.0
    %497 = vmatprep.subr.mxu0 0.0
    %498 = vmatpush1.msra.mxu0 0.0
    %499 = vmatprep.subr.mxu0 0.0
    %500 = vmatpush1.msra.mxu0 0.0
    %501 = vmatprep.subr.mxu0 0.0
    %502 = vmatpush1.msra.mxu0 0.0
    %503 = vmatprep.subr.mxu0 0.0
    %504 = vmatpush1.msra.mxu0 0.0
    %505 = vmatprep.subr.mxu0 0.0
    %506 = vmatpush1.msra.mxu0 0.0
    %507 = vmatprep.subr.mxu0 0.0
    %508 = vmatpush1.msra.mxu0 0.0
    %509 = vmatprep.subr.mxu0 0.0
    %510 = vmatpush1.msra.mxu0 0.0
    %511 = vmatprep.subr.mxu0 0.0
    %512 = vmatpush1.msra.mxu0 0.0
    %513 = vmatprep.subr.mxu0 0.0
    %514 = vmatpush1.msra.mxu0 0.0
    %515 = vmatprep.subr.mxu0 0.0
    %516 = vmatpush1.msra.mxu0 0.0
    %517 = vmatprep.subr.mxu0 0.0
    %518 = vmatpush1.msra.mxu0 0.0
    %519 = vmatprep.subr.mxu0 0.0
    %520 = vmatpush1.msra.mxu0 0.0
    %521 = vmatprep.subr.mxu0 0.0
    %522 = vmatpush1.msra.mxu0 0.0
    %523 = vmatprep.subr.mxu0 0.0
    %524 = vmatpush1.msra.mxu0 0.0
    %525 = vmatprep.subr.mxu0 0.0
    %526 = vmatpush1.msra.mxu0 0.0
    %527 = vmatprep.subr.mxu0 0.0
    %528 = vmatpush1.msra.mxu0 0.0
    %529 = vmatprep.mubr.f32.mxu0 0.0
    %530 = vmatmul.mubr.f32.gmra.mrb[0].mxu0 %v463
    %v531 = vpop.f32.mrb[0].mxu0
    %v532 = vadd.f32 0.0, %v531
    %v533 = vpop.f32.mrb[0].mxu0
    %v534 = vadd.f32 0.0, %v533
    %535 = vdwg.mxu0
    %v536 = vmul.f32 %v446, %v532
    %v537 = vmul.f32 %v448, %v534
    %v538 = vmul.f32 %v33, %v536
    %v539 = vmul.f32 %v34, %v537
    %v540 = vld [vmem:[%s8] sm:$0xff]
    %v541 = vld [vmem:[%s8 + $0x8] sm:$0xff]
    %v543 = vsel %vm151, %v540, 0
    %v546 = vsel %vm151, %v541, 0
    %548 = vmatprep.subr.mxu0 %v539
    %549 = vmatpush1.msra.mxu0 %v538
    %550 = vmatprep.subr.mxu0 0.0
    %551 = vmatpush1.msra.mxu0 0.0
    %552 = vmatprep.subr.mxu0 0.0
    %553 = vmatpush1.msra.mxu0 0.0
    %554 = vmatprep.subr.mxu0 0.0
    %555 = vmatpush1.msra.mxu0 0.0
    %556 = vmatprep.subr.mxu0 0.0
    %557 = vmatpush1.msra.mxu0 0.0
    %558 = vmatprep.subr.mxu0 0.0
    %559 = vmatpush1.msra.mxu0 0.0
    %560 = vmatprep.subr.mxu0 0.0
    %561 = vmatpush1.msra.mxu0 0.0
    %562 = vmatprep.subr.mxu0 0.0
    %563 = vmatpush1.msra.mxu0 0.0
    %564 = vmatprep.subr.mxu0 0.0
    %565 = vmatpush1.msra.mxu0 0.0
    %566 = vmatprep.subr.mxu0 0.0
    %567 = vmatpush1.msra.mxu0 0.0
    %568 = vmatprep.subr.mxu0 0.0
    %569 = vmatpush1.msra.mxu0 0.0
    %570 = vmatprep.subr.mxu0 0.0
    %571 = vmatpush1.msra.mxu0 0.0
    %572 = vmatprep.subr.mxu0 0.0
    %573 = vmatpush1.msra.mxu0 0.0
    %574 = vmatprep.subr.mxu0 0.0
    %575 = vmatpush1.msra.mxu0 0.0
    %576 = vmatprep.subr.mxu0 0.0
    %577 = vmatpush1.msra.mxu0 0.0
    %578 = vmatprep.subr.mxu0 0.0
    %579 = vmatpush1.msra.mxu0 0.0
    %580 = vmatprep.subr.mxu0 0.0
    %581 = vmatpush1.msra.mxu0 0.0
    %582 = vmatprep.subr.mxu0 0.0
    %583 = vmatpush1.msra.mxu0 0.0
    %584 = vmatprep.subr.mxu0 0.0
    %585 = vmatpush1.msra.mxu0 0.0
    %586 = vmatprep.subr.mxu0 0.0
    %587 = vmatpush1.msra.mxu0 0.0
    %588 = vmatprep.subr.mxu0 0.0
    %589 = vmatpush1.msra.mxu0 0.0
    %590 = vmatprep.subr.mxu0 0.0
    %591 = vmatpush1.msra.mxu0 0.0
    %592 = vmatprep.subr.mxu0 0.0
    %593 = vmatpush1.msra.mxu0 0.0
    %594 = vmatprep.subr.mxu0 0.0
    %595 = vmatpush1.msra.mxu0 0.0
    %596 = vmatprep.subr.mxu0 0.0
    %597 = vmatpush1.msra.mxu0 0.0
    %598 = vmatprep.subr.mxu0 0.0
    %599 = vmatpush1.msra.mxu0 0.0
    %600 = vmatprep.subr.mxu0 0.0
    %601 = vmatpush1.msra.mxu0 0.0
    %602 = vmatprep.subr.mxu0 0.0
    %603 = vmatpush1.msra.mxu0 0.0
    %604 = vmatprep.subr.mxu0 0.0
    %605 = vmatpush1.msra.mxu0 0.0
    %606 = vmatprep.subr.mxu0 0.0
    %607 = vmatpush1.msra.mxu0 0.0
    %608 = vmatprep.subr.mxu0 0.0
    %609 = vmatpush1.msra.mxu0 0.0
    %610 = vmatprep.subr.mxu0 0.0
    %611 = vmatpush1.msra.mxu0 0.0
    %612 = vmatprep.mubr.f32.mxu0 0.0
    %613 = vmatmul.mubr.f32.gmra.mrb[0].mxu0 %v543
    %v614 = vpop.f32.mrb[0].mxu0
    %v615 = vadd.f32 0.0, %v614
    %v616 = vpop.f32.mrb[0].mxu0
    %v617 = vadd.f32 0.0, %v616
    %618 = vmatprep.mubr.f32.mxu0 0.0
    %619 = vmatmul.mubr.f32.gmra.mrb[0].mxu0 %v546
    %v620 = vpop.f32.mrb[0].mxu0
    %v621 = vadd.f32 0.0, %v620
    %v622 = vpop.f32.mrb[0].mxu0
    %v623 = vadd.f32 0.0, %v622
    %624 = vdwg.mxu0
    %625 = vst [vmem:[#allocation2] sm:$0xff] %v615
    %626 = vst [vmem:[#allocation2 + $0x8] sm:$0xff] %v617
    %627 = vst [vmem:[#allocation2 + $0x10] sm:$0xff] %v621
    %628 = vst [vmem:[#allocation2 + $0x18] sm:$0xff] %v623
    // Predicated region
    $region38: #{tpu_custom_call.1} parent=1 // pred_check
      _
    $region39: #{tpu_custom_call.1} parent=1 // pred_check_branch
      %630 = sbr.rel (0) target = $region41
    $region40: #{tpu_custom_call.1} parent=1 // pred_region
      %s632 = ssub.s32 512, 512
      %633 = vsyncadd [#allocation3], %s632
      %s634 = sshll.u32 [#allocation2], 4
      %s635 = int_to_ptr.vmem [resolvable:$true] %s634
      %640 = dma.vmem_to_hbm [thread:$0]  %s635, 512, %s9, [#allocation3], 256, 256, 16
    $region41: #{tpu_custom_call.1} parent=1 // pred_fallthru
      _
    // Predicated region
    $region42: #{tpu_custom_call.1} parent=1 // pred_check
      _
    $region43: #{tpu_custom_call.1} parent=1 // pred_check_branch
      %642 = sbr.rel (0) target = $region45
    $region44: #{tpu_custom_call.1} parent=1 // pred_region
      %643 = dma.done [#allocation3], 512
    $region45: #{tpu_custom_call.1} parent=1 // pred_fallthru
      _
    %644 = vsyncpa [#allocation3], 1

</llo_original>
